<compile_context>
chip_gen: v7x
topology: tpu7x:2x2x1
jax: 0.10.0
libtpu: 0.0.40
codegen_flags: <defaults>
</compile_context>

<pallas_src>
import functools

import jax
import jax.numpy as jnp
from jax.experimental import pallas as pl
from jax.experimental.pallas import tpu as pltpu


def _round_up(x, m):
    return ((x + m - 1) // m) * m


def _pick_tm(n):
    """Row-tile heuristic (see header comment)."""
    if n < 256:
        return _round_up(max(n, 1), 8)   # single tile; launch/latency bound
    if n < 1024:
        return 256                       # grid >= 2 for n >= 512 (v7x megacore)
    return 512                           # amortize per-step overhead; v5e-safe


def _fpn_predictor_kernel(x_ref, w_ref, bc_ref, bb_ref,
                          scores_ref, bbox_ref, *, cls_pad):
    """One fused matmul feeding both heads.

    x_ref:      (TM, C)                float32 tile of ROI feature rows
    w_ref:      (C, cls_pad+bbox_pad)  bfloat16 fused weights (VMEM-resident)
    bc_ref:     (1, cls_pad)           float32 cls bias
    bb_ref:     (1, bbox_pad)          float32 bbox bias
    scores_ref: (TM, cls_pad)          float32
    bbox_ref:   (TM, bbox_pad)         float32
    """
    x_bf = x_ref[...].astype(jnp.bfloat16)       # cast in-kernel (no extra HBM pass)
    acc = jnp.dot(x_bf, w_ref[...], preferred_element_type=jnp.float32)
    # 128-aligned static splits of the accumulator: pure vreg selection.
    scores_ref[...] = acc[:, :cls_pad] + bc_ref[...]
    bbox_ref[...] = acc[:, cls_pad:] + bb_ref[...]


def prepare_fpn_predictor_params(w_cls, b_cls, w_bbox, b_bbox):
    """One-time (per checkpoint) weight prep: fuse + lane-pad + bf16 cast.

    w_cls: (C, num_classes), w_bbox: (C, num_bbox_reg_classes*4), transposed
    relative to nn.Linear's (out, in) storage.
    """
    c, num_classes = w_cls.shape
    num_bbox_out = w_bbox.shape[1]
    cls_pad = _round_up(num_classes, 128)
    bbox_pad = _round_up(num_bbox_out, 128)

    w_fused = jnp.concatenate(
        [jnp.pad(w_cls, ((0, 0), (0, cls_pad - num_classes))),
         jnp.pad(w_bbox, ((0, 0), (0, bbox_pad - num_bbox_out)))],
        axis=1).astype(jnp.bfloat16)

    b_cls_p = jnp.pad(b_cls.reshape(1, -1).astype(jnp.float32),
                      ((0, 0), (0, cls_pad - num_classes)))
    b_bbox_p = jnp.pad(b_bbox.reshape(1, -1).astype(jnp.float32),
                       ((0, 0), (0, bbox_pad - num_bbox_out)))

    return {
        "w_fused": w_fused, "b_cls": b_cls_p, "b_bbox": b_bbox_p,
        "in_channels": c, "num_classes": num_classes,
        "num_bbox_out": num_bbox_out, "cls_pad": cls_pad, "bbox_pad": bbox_pad,
    }


def fpn_predictor(x, params):
    """x: (N, C) or (N, C, 1, 1) float32. Returns (scores, bbox_deltas), f32."""
    if x.ndim == 4:
        assert x.shape[2] == 1 and x.shape[3] == 1
        x = x.reshape(x.shape[0], -1)
    n, c = x.shape
    assert c == params["in_channels"]

    cls_pad = params["cls_pad"]
    bbox_pad = params["bbox_pad"]
    out_pad = cls_pad + bbox_pad

    tm = _pick_tm(n)
    grid = (pl.cdiv(n, tm),)   # ragged final row block handled by Pallas

    kernel = functools.partial(_fpn_predictor_kernel, cls_pad=cls_pad)

    scores_p, bbox_p = pl.pallas_call(
        kernel,
        out_shape=(jax.ShapeDtypeStruct((n, cls_pad), jnp.float32),
                   jax.ShapeDtypeStruct((n, bbox_pad), jnp.float32)),
        grid=grid,
        in_specs=[
            pl.BlockSpec((tm, c), lambda i: (i, 0)),        # x tiles, pipelined
            pl.BlockSpec((c, out_pad), lambda i: (0, 0)),   # fused weights, resident
            pl.BlockSpec((1, cls_pad), lambda i: (0, 0)),   # cls bias, resident
            pl.BlockSpec((1, bbox_pad), lambda i: (0, 0)),  # bbox bias, resident
        ],
        out_specs=(pl.BlockSpec((tm, cls_pad), lambda i: (i, 0)),
                   pl.BlockSpec((tm, bbox_pad), lambda i: (i, 0))),
        compiler_params=pltpu.CompilerParams(
            dimension_semantics=("parallel",),
        ),
    )(x, params["w_fused"], params["b_cls"], params["b_bbox"])

    # Column slices start at 0 -> no relayout copy.
    scores = scores_p[:, :params["num_classes"]]
    bbox_deltas = bbox_p[:, :params["num_bbox_out"]]
    return scores, bbox_deltas


def init_fpn_predictor_params(key, in_channels, num_classes,
                              cls_agnostic_bbox_reg=False):
    """Deterministic init matching the PyTorch module's __init__."""
    num_bbox_reg_classes = 2 if cls_agnostic_bbox_reg else num_classes
    k1, k2 = jax.random.split(key)
    # nn.Linear weight is (out, in); we store it transposed (in, out).
    w_cls = (0.01 * jax.random.normal(k1, (num_classes, in_channels),
                                      dtype=jnp.float32)).T
    b_cls = jnp.zeros((num_classes,), dtype=jnp.float32)
    w_bbox = (0.001 * jax.random.normal(k2, (num_bbox_reg_classes * 4,
                                             in_channels),
                                        dtype=jnp.float32)).T
    b_bbox = jnp.zeros((num_bbox_reg_classes * 4,), dtype=jnp.float32)
    return w_cls, b_cls, w_bbox, b_bbox


if __name__ == "__main__":
    key = jax.random.PRNGKey(0)
    kx1, kx2, kp = jax.random.split(key, 3)

    C = 128                 # representation_size == in_channels
    NUM_CLASSES = 16        # cfg.MODEL.ROI_BOX_HEAD.NUM_CLASSES
    CLS_AGNOSTIC = False

    w_cls, b_cls, w_bbox, b_bbox = init_fpn_predictor_params(
        kp, C, NUM_CLASSES, CLS_AGNOSTIC)
    # Weight prep hoisted out of the per-call path.
    params = prepare_fpn_predictor_params(w_cls, b_cls, w_bbox, b_bbox)

    def check(x):
        n = x.shape[0]
        scores, bbox_deltas = fpn_predictor(x, params)
        jax.block_until_ready((scores, bbox_deltas))
        assert scores.shape == (n, NUM_CLASSES)
        assert bbox_deltas.shape == (n, NUM_CLASSES * 4)

        x2 = x.reshape(n, -1)

        # Reference 1: same bf16-input / f32-accumulate math in plain JAX.
        xb = x2.astype(jnp.bfloat16)
        s_ref = jnp.dot(xb, w_cls.astype(jnp.bfloat16),
                        preferred_element_type=jnp.float32) + b_cls
        b_ref = jnp.dot(xb, w_bbox.astype(jnp.bfloat16),
                        preferred_element_type=jnp.float32) + b_bbox
        assert jnp.allclose(scores, s_ref, atol=2e-5)
        assert jnp.allclose(bbox_deltas, b_ref, atol=2e-5)

        # Reference 2: full-f32 PyTorch forward (loose tol for the bf16 cast).
        s32 = x2 @ w_cls + b_cls
        b32 = x2 @ w_bbox + b_bbox
        assert jnp.allclose(scores, s32, atol=1e-2)
        assert jnp.allclose(bbox_deltas, b32, atol=1e-2)

    # Case 1: tiny ROI batch, 4-D (N, C, 1, 1) input, single-tile grid.
    x_small = jax.random.normal(kx1, (8, C, 1, 1), dtype=jnp.float32)
    check(x_small)

    # Case 2: multi-tile grid with a ragged final row block (no wrapper
    # padding / no extra HBM pass over x).
    x_big = jax.random.normal(kx2, (300, C), dtype=jnp.float32)
    check(x_big)

    print("KERNEL_OK")
</pallas_src>

<mosaic_0001>
module attributes {stable_mosaic.version = 11 : i64} {
  func.func @_fpn_predictor_kernel(%arg0: i32, %arg1: memref<8x128xf32, #tpu.memory_space<vmem>>, %arg2: memref<128x256xbf16, #tpu.memory_space<vmem>>, %arg3: memref<1x128xf32, #tpu.memory_space<vmem>>, %arg4: memref<1x128xf32, #tpu.memory_space<vmem>>, %arg5: memref<8x128xf32, #tpu.memory_space<vmem>>, %arg6: memref<8x128xf32, #tpu.memory_space<vmem>>) attributes {dimension_semantics = [#tpu.dimension_semantics<parallel>], iteration_bounds = array<i64: 1>, scalar_prefetch = 0 : i64, scratch_operands = 0 : i64, tpu.core_type = #tpu.core_type<tc>, window_params = [{transform_indices = @transform_0, window_bounds = array<i64: 8, 128>}, {pipeline_mode = #tpu.pipeline_mode<synchronous>, transform_indices = @transform_1, window_bounds = array<i64: 128, 256>}, {pipeline_mode = #tpu.pipeline_mode<synchronous>, transform_indices = @transform_2, window_bounds = array<i64: 1, 128>}, {pipeline_mode = #tpu.pipeline_mode<synchronous>, transform_indices = @transform_3, window_bounds = array<i64: 1, 128>}, {transform_indices = @transform_4, window_bounds = array<i64: 8, 128>}, {transform_indices = @transform_5, window_bounds = array<i64: 8, 128>}]} {
    %c0 = arith.constant 0 : index
    %c0_0 = arith.constant 0 : index
    %0 = vector.load %arg1[%c0, %c0_0] : memref<8x128xf32, #tpu.memory_space<vmem>>, vector<8x128xf32>
    %1 = arith.truncf %0 : vector<8x128xf32> to vector<8x128xbf16>
    %c0_1 = arith.constant 0 : index
    %c0_2 = arith.constant 0 : index
    %2 = vector.load %arg2[%c0_1, %c0_2] : memref<128x256xbf16, #tpu.memory_space<vmem>>, vector<128x256xbf16>
    %cst = arith.constant dense<0.000000e+00> : vector<8x256xf32>
    %3 = tpu.matmul %1, %2, %cst {dimension_numbers = #tpu.dot_dimension_numbers<[1], [0], [0], [1], [0, 0, 1, 1], [], []>} : vector<8x128xbf16>, vector<128x256xbf16>, vector<8x256xf32> -> vector<8x256xf32>
    %4 = vector.extract_strided_slice %3 {offsets = [0, 0], sizes = [8, 128], strides = [1, 1]} : vector<8x256xf32> to vector<8x128xf32>
    %c0_3 = arith.constant 0 : index
    %c0_4 = arith.constant 0 : index
    %5 = vector.load %arg3[%c0_3, %c0_4] : memref<1x128xf32, #tpu.memory_space<vmem>>, vector<1x128xf32>
    %6 = vector.broadcast %5 : vector<1x128xf32> to vector<8x128xf32>
    %7 = arith.addf %4, %6 : vector<8x128xf32>
    %c0_5 = arith.constant 0 : index
    %c0_6 = arith.constant 0 : index
    %8 = vector.load %arg5[%c0_5, %c0_6] : memref<8x128xf32, #tpu.memory_space<vmem>>, vector<8x128xf32>
    tpu.vector_store %arg5[%c0_5, %c0_6], %7 {strides = array<i32>} : memref<8x128xf32, #tpu.memory_space<vmem>>, vector<8x128xf32>,
    %9 = vector.extract_strided_slice %3 {offsets = [0, 128], sizes = [8, 128], strides = [1, 1]} : vector<8x256xf32> to vector<8x128xf32>
    %c0_7 = arith.constant 0 : index
    %c0_8 = arith.constant 0 : index
    %10 = vector.load %arg4[%c0_7, %c0_8] : memref<1x128xf32, #tpu.memory_space<vmem>>, vector<1x128xf32>
    %11 = vector.broadcast %10 : vector<1x128xf32> to vector<8x128xf32>
    %12 = arith.addf %9, %11 : vector<8x128xf32>
    %c0_9 = arith.constant 0 : index
    %c0_10 = arith.constant 0 : index
    %13 = vector.load %arg6[%c0_9, %c0_10] : memref<8x128xf32, #tpu.memory_space<vmem>>, vector<8x128xf32>
    tpu.vector_store %arg6[%c0_9, %c0_10], %12 {strides = array<i32>} : memref<8x128xf32, #tpu.memory_space<vmem>>, vector<8x128xf32>,
    return
  }
  func.func @transform_0(%arg0: i32) -> (i32, i32) {
    %c0_i32 = arith.constant 0 : i32
    %c0_i32_0 = arith.constant 0 : i32
    return %arg0, %c0_i32 : i32, i32
  }
  func.func @transform_1(%arg0: i32) -> (i32, i32) {
    %c0_i32 = arith.constant 0 : i32
    %c0_i32_0 = arith.constant 0 : i32
    %c0_i32_1 = arith.constant 0 : i32
    return %c0_i32, %c0_i32_0 : i32, i32
  }
  func.func @transform_2(%arg0: i32) -> (i32, i32) {
    %c0_i32 = arith.constant 0 : i32
    %c0_i32_0 = arith.constant 0 : i32
    %c0_i32_1 = arith.constant 0 : i32
    return %c0_i32, %c0_i32_0 : i32, i32
  }
  func.func @transform_3(%arg0: i32) -> (i32, i32) {
    %c0_i32 = arith.constant 0 : i32
    %c0_i32_0 = arith.constant 0 : i32
    %c0_i32_1 = arith.constant 0 : i32
    return %c0_i32, %c0_i32_0 : i32, i32
  }
  func.func @transform_4(%arg0: i32) -> (i32, i32) {
    %c0_i32 = arith.constant 0 : i32
    %c0_i32_0 = arith.constant 0 : i32
    return %arg0, %c0_i32 : i32, i32
  }
  func.func @transform_5(%arg0: i32) -> (i32, i32) {
    %c0_i32 = arith.constant 0 : i32
    %c0_i32_0 = arith.constant 0 : i32
    return %arg0, %c0_i32 : i32, i32
  }
}

</mosaic_0001>

<llo_original>
// kernel: tpu_custom_call.1
$region0: #{tpu_custom_call.1}
  #allocation0 [shape = 'u32[]', space=smem, size = 0x4, offset = 0x4, fixed_abs, tag = 'smem constant byte address 0x4 - core index']
  #allocation1 [shape = 'u32[144,128]{1,0:T(1,128)}', space=vmem, size = 0x12000, scoped, tag = 'internal scratch']
  %s0 = inlined_call_operand.hbm [shape: f32[8,128], index: 0, kind: input, shape index: {}]
  %s1 = inlined_call_operand.hbm [shape: bf16[128,256], index: 1, kind: input, shape index: {}]
  %s2 = inlined_call_operand.vmem [shape: f32[1,128], index: 2, kind: input, shape index: {}]
  %s3 = inlined_call_operand.vmem [shape: f32[1,128], index: 3, kind: input, shape index: {}]
  %s4 = inlined_call_operand.hbm [shape: f32[8,128], index: 4, kind: output, shape index: {0}]
  %s5 = inlined_call_operand.hbm [shape: f32[8,128], index: 5, kind: output, shape index: {1}]
  %6 = xla_tuple %s4, %s5
  %s7 = sld [smem:[#allocation0]]
  $region42: #{tpu_custom_call.1} parent=0
    _
  %s9 = ssub.s32 1, %s7
  %s10 = scalar_select 0, %s9, %s7
  $region1: #{tpu_custom_call.1} parent=0
    #allocation2 [shape = 'u8[4096]{0}', space=vmem, size = 0x1000, scoped, tag = 'input window, operand 0, single buffered']
    #allocation3 [shape = 's32[1]{0}', space=sflag, size = 0x4, scoped, tag = 'scoped memory for tpu_custom_call.1']
    #allocation4 [shape = 's32[1]{0}', space=sflag, size = 0x4, scoped, tag = 'scoped memory for tpu_custom_call.1']
    #allocation5 [shape = 'u8[65536]{0}', space=vmem, size = 0x10000, scoped, tag = 'input window, operand 1, single buffered']
    #allocation6 [shape = 's32[1]{0}', space=sflag, size = 0x4, scoped, tag = 'scoped memory for tpu_custom_call.1']
    #allocation7 [shape = 'u8[4096]{0}', space=vmem, size = 0x1000, scoped, tag = 'output window, operand 0, single buffered']
    #allocation8 [shape = 'u8[4096]{0}', space=vmem, size = 0x1000, scoped, tag = 'output window, operand 1, single buffered']
    #allocation9 [shape = 's32[1]{0}', space=sflag, size = 0x4, scoped, tag = 'scoped memory for tpu_custom_call.1']
    %11 = vsyncpa [#allocation3], 0
    %12 = vsyncpa [#allocation6], 0
    %13 = vsyncpa [#allocation4], 0
    %14 = vsyncpa [#allocation9], 0
    // Predicated region
    $region2: #{tpu_custom_call.1} parent=1 // pred_check
      _
    $region3: #{tpu_custom_call.1} parent=1 // pred_check_branch
      %16 = sbr.rel (0) target = $region5
    $region4: #{tpu_custom_call.1} parent=1 // pred_region
      %s18 = ssub.s32 128, 128
      %19 = vsyncadd [#allocation3], %s18
      %s21 = sshll.u32 [#allocation2], 4
      %s22 = int_to_ptr.vmem [resolvable:$true] %s21
      %24 = dma.hbm_to_vmem [thread:$0]  %s0, 128, %s22, [#allocation3]
    $region5: #{tpu_custom_call.1} parent=1 // pred_fallthru
      _
    // Predicated region
    $region6: #{tpu_custom_call.1} parent=1 // pred_check
      _
    $region7: #{tpu_custom_call.1} parent=1 // pred_check_branch
      %26 = sbr.rel (0) target = $region9
    $region8: #{tpu_custom_call.1} parent=1 // pred_region
      %s28 = ssub.s32 2048, 2048
      %29 = vsyncadd [#allocation6], %s28
      %s30 = sshll.u32 [#allocation5], 4
      %s31 = int_to_ptr.vmem [resolvable:$true] %s30
      %36 = dma.hbm_to_vmem [thread:$0]  %s1, 2048, %s31, [#allocation6], 128, 128, 8
    $region9: #{tpu_custom_call.1} parent=1 // pred_fallthru
      _
    // Predicated region
    $region10: #{tpu_custom_call.1} parent=1 // pred_check
      _
    $region11: #{tpu_custom_call.1} parent=1 // pred_check_branch
      %38 = sbr.rel (0) target = $region13
    $region12: #{tpu_custom_call.1} parent=1 // pred_region
      _
    $region13: #{tpu_custom_call.1} parent=1 // pred_fallthru
      _
    // Predicated region
    $region14: #{tpu_custom_call.1} parent=1 // pred_check
      _
    $region15: #{tpu_custom_call.1} parent=1 // pred_check_branch
      %40 = sbr.rel (0) target = $region17
    $region16: #{tpu_custom_call.1} parent=1 // pred_region
      _
    $region17: #{tpu_custom_call.1} parent=1 // pred_fallthru
      _
    // Predicated region
    $region18: #{tpu_custom_call.1} parent=1 // pred_check
      _
    $region19: #{tpu_custom_call.1} parent=1 // pred_check_branch
      %42 = sbr.rel (0) target = $region21
    $region20: #{tpu_custom_call.1} parent=1 // pred_region
      %43 = dma.done [#allocation3], 128
    $region21: #{tpu_custom_call.1} parent=1 // pred_fallthru
      _
    // Predicated region
    $region22: #{tpu_custom_call.1} parent=1 // pred_check
      _
    $region23: #{tpu_custom_call.1} parent=1 // pred_check_branch
      %45 = sbr.rel (0) target = $region25
    $region24: #{tpu_custom_call.1} parent=1 // pred_region
      %46 = dma.done [#allocation6], 2048
    $region25: #{tpu_custom_call.1} parent=1 // pred_fallthru
      _
    %v48 = vld [vmem:[#allocation2] sm:$0xff]
    %v49 = vpack.c.bf16 %v48, %v48
    %v50 = vld [vmem:[#allocation5] sm:$0xff]
    %v51 = vld [vmem:[#allocation5 + $0x8] sm:$0xff]
    %v52 = vld [vmem:[#allocation5 + $0x10] sm:$0xff]
    %v53 = vld [vmem:[#allocation5 + $0x18] sm:$0xff]
    %v54 = vld [vmem:[#allocation5 + $0x20] sm:$0xff]
    %v55 = vld [vmem:[#allocation5 + $0x28] sm:$0xff]
    %v56 = vld [vmem:[#allocation5 + $0x30] sm:$0xff]
    %v57 = vld [vmem:[#allocation5 + $0x38] sm:$0xff]
    %v58 = vld [vmem:[#allocation5 + $0x40] sm:$0xff]
    %v59 = vld [vmem:[#allocation5 + $0x48] sm:$0xff]
    %v60 = vld [vmem:[#allocation5 + $0x50] sm:$0xff]
    %v61 = vld [vmem:[#allocation5 + $0x58] sm:$0xff]
    %v62 = vld [vmem:[#allocation5 + $0x60] sm:$0xff]
    %v63 = vld [vmem:[#allocation5 + $0x68] sm:$0xff]
    %v64 = vld [vmem:[#allocation5 + $0x70] sm:$0xff]
    %v65 = vld [vmem:[#allocation5 + $0x78] sm:$0xff]
    %v82 = vunpack.c.l.b16 %v50
    %v83 = vunpack.c.h.b16 %v50
    %v84 = vunpack.c.l.b16 %v51
    %v85 = vunpack.c.h.b16 %v51
    %v86 = vunpack.c.l.b16 %v52
    %v87 = vunpack.c.h.b16 %v52
    %v88 = vunpack.c.l.b16 %v53
    %v89 = vunpack.c.h.b16 %v53
    %v90 = vunpack.c.l.b16 %v54
    %v91 = vunpack.c.h.b16 %v54
    %v92 = vunpack.c.l.b16 %v55
    %v93 = vunpack.c.h.b16 %v55
    %v94 = vunpack.c.l.b16 %v56
    %v95 = vunpack.c.h.b16 %v56
    %v96 = vunpack.c.l.b16 %v57
    %v97 = vunpack.c.h.b16 %v57
    %v98 = vunpack.c.l.b16 %v58
    %v99 = vunpack.c.h.b16 %v58
    %v100 = vunpack.c.l.b16 %v59
    %v101 = vunpack.c.h.b16 %v59
    %v102 = vunpack.c.l.b16 %v60
    %v103 = vunpack.c.h.b16 %v60
    %v104 = vunpack.c.l.b16 %v61
    %v105 = vunpack.c.h.b16 %v61
    %v106 = vunpack.c.l.b16 %v62
    %v107 = vunpack.c.h.b16 %v62
    %v108 = vunpack.c.l.b16 %v63
    %v109 = vunpack.c.h.b16 %v63
    %v110 = vunpack.c.l.b16 %v64
    %v111 = vunpack.c.h.b16 %v64
    %v112 = vunpack.c.l.b16 %v65
    %v113 = vunpack.c.h.b16 %v65
    %v114 = vpack.c.b16 %v84, %v82
    %v115 = vpack.c.b16 %v85, %v83
    %v116 = vpack.c.b16 %v88, %v86
    %v117 = vpack.c.b16 %v89, %v87
    %v118 = vpack.c.b16 %v92, %v90
    %v119 = vpack.c.b16 %v93, %v91
    %v120 = vpack.c.b16 %v96, %v94
    %v121 = vpack.c.b16 %v97, %v95
    %v122 = vpack.c.b16 %v100, %v98
    %v123 = vpack.c.b16 %v101, %v99
    %v124 = vpack.c.b16 %v104, %v102
    %v125 = vpack.c.b16 %v105, %v103
    %v126 = vpack.c.b16 %v108, %v106
    %v127 = vpack.c.b16 %v109, %v107
    %v128 = vpack.c.b16 %v112, %v110
    %v129 = vpack.c.b16 %v113, %v111
    %146 = vmatprep.subr.bf16.mxu0 %v115
    %147 = vmatpush1.bf16.msra.mxu0 %v114
    %148 = vmatprep.subr.bf16.mxu0 %v117
    %149 = vmatpush1.bf16.msra.mxu0 %v116
    %150 = vmatprep.subr.bf16.mxu0 %v119
    %151 = vmatpush1.bf16.msra.mxu0 %v118
    %152 = vmatprep.subr.bf16.mxu0 %v121
    %153 = vmatpush1.bf16.msra.mxu0 %v120
    %154 = vmatprep.subr.bf16.mxu0 %v123
    %155 = vmatpush1.bf16.msra.mxu0 %v122
    %156 = vmatprep.subr.bf16.mxu0 %v125
    %157 = vmatpush1.bf16.msra.mxu0 %v124
    %158 = vmatprep.subr.bf16.mxu0 %v127
    %159 = vmatpush1.bf16.msra.mxu0 %v126
    %160 = vmatprep.subr.bf16.mxu0 %v129
    %161 = vmatpush1.bf16.msra.mxu0 %v128
    %162 = vmatprep.subr.bf16.mxu0 0
    %163 = vmatpush1.bf16.msra.mxu0 0
    %164 = vmatprep.subr.bf16.mxu0 0
    %165 = vmatpush1.bf16.msra.mxu0 0
    %166 = vmatprep.subr.bf16.mxu0 0
    %167 = vmatpush1.bf16.msra.mxu0 0
    %168 = vmatprep.subr.bf16.mxu0 0
    %169 = vmatpush1.bf16.msra.mxu0 0
    %170 = vmatprep.subr.bf16.mxu0 0
    %171 = vmatpush1.bf16.msra.mxu0 0
    %172 = vmatprep.subr.bf16.mxu0 0
    %173 = vmatpush1.bf16.msra.mxu0 0
    %174 = vmatprep.subr.bf16.mxu0 0
    %175 = vmatpush1.bf16.msra.mxu0 0
    %176 = vmatprep.subr.bf16.mxu0 0
    %177 = vmatpush1.bf16.msra.mxu0 0
    %178 = vmatprep.mubr.bf16.mxu0 0
    %179 = vmatmul.mubr.bf16.gmra.mrb[0].mxu0 %v49
    %v180 = vpop.f32.mrb[0].mxu0
    %v181 = vadd.f32 0.0, %v180
    %v182 = vpop.f32.mrb[0].mxu0
    %v183 = vadd.f32 0.0, %v182
    %v184 = vpop.f32.mrb[0].mxu0
    %v185 = vpop.f32.mrb[0].mxu0
    %186 = vdwg.mxu0
    %v187 = vld [vmem:[%s2] sm:$0x1]
    %v189 = vlaneseq
    %v190 = vshrl.u32 %v189, 7
    %v191 = vsub.s32 0, %v190
    %v192 = vrot.slane %v187, %v191
    %v194 = vadd.f32 %v181, %v192
    %195 = vst [vmem:[#allocation7] sm:$0xff] %v194
    %v196 = vld [vmem:[%s3] sm:$0x1]
    %v198 = vlaneseq
    %v199 = vshrl.u32 %v198, 7
    %v200 = vsub.s32 0, %v199
    %v201 = vrot.slane %v196, %v200
    %v203 = vadd.f32 %v183, %v201
    %204 = vst [vmem:[#allocation8] sm:$0xff] %v203
    // Predicated region
    $region26: #{tpu_custom_call.1} parent=1 // pred_check
      _
    $region27: #{tpu_custom_call.1} parent=1 // pred_check_branch
      %206 = sbr.rel (0) target = $region29
    $region28: #{tpu_custom_call.1} parent=1 // pred_region
      %s208 = ssub.s32 128, 128
      %209 = vsyncadd [#allocation4], %s208
      %s211 = sshll.u32 [#allocation7], 4
      %s212 = int_to_ptr.vmem [resolvable:$true] %s211
      %214 = dma.vmem_to_hbm [thread:$0]  %s212, 128, %s4, [#allocation4]
    $region29: #{tpu_custom_call.1} parent=1 // pred_fallthru
      _
    // Predicated region
    $region30: #{tpu_custom_call.1} parent=1 // pred_check
      _
    $region31: #{tpu_custom_call.1} parent=1 // pred_check_branch
      %216 = sbr.rel (0) target = $region33
    $region32: #{tpu_custom_call.1} parent=1 // pred_region
      %s218 = ssub.s32 128, 128
      %219 = vsyncadd [#allocation9], %s218
      %s221 = sshll.u32 [#allocation8], 4
      %s222 = int_to_ptr.vmem [resolvable:$true] %s221
      %224 = dma.vmem_to_hbm [thread:$0]  %s222, 128, %s5, [#allocation9]
    $region33: #{tpu_custom_call.1} parent=1 // pred_fallthru
      _
    // Predicated region
    $region34: #{tpu_custom_call.1} parent=1 // pred_check
      _
    $region35: #{tpu_custom_call.1} parent=1 // pred_check_branch
      %226 = sbr.rel (0) target = $region37
    $region36: #{tpu_custom_call.1} parent=1 // pred_region
      %227 = dma.done [#allocation4], 128
    $region37: #{tpu_custom_call.1} parent=1 // pred_fallthru
      _
    // Predicated region
    $region38: #{tpu_custom_call.1} parent=1 // pred_check
      _
    $region39: #{tpu_custom_call.1} parent=1 // pred_check_branch
      %229 = sbr.rel (0) target = $region41
    $region40: #{tpu_custom_call.1} parent=1 // pred_region
      %230 = dma.done [#allocation9], 128
    $region41: #{tpu_custom_call.1} parent=1 // pred_fallthru
      _
    %231 = vsyncpa [#allocation3], 1
    %232 = vsyncpa [#allocation6], 1
    %233 = vsyncpa [#allocation4], 1
    %234 = vsyncpa [#allocation9], 1

</llo_original>
